<compile_context>
chip_gen: v7x
topology: tpu7x:2x2x1
jax: 0.10.0
libtpu: 0.0.40
codegen_flags: <defaults>
</compile_context>

<pallas_src>
import functools
import math

import jax
import jax.numpy as jnp
from jax.experimental import pallas as pl
from jax.experimental.pallas import tpu as pltpu


# --------------------------------------------------------------------------------------
# Kernel 1: 1x1 conv (C_in -> hidden_dim) == per-pixel matmul over channels, row-tiled
# --------------------------------------------------------------------------------------
def conv1x1_kernel(x_ref, w_ref, b_ref, o_ref):
    # x: [TM, C_in] (cast to bf16 in-kernel), w: [C_in, E] bf16 (pre-transposed), b: [1, E] f32
    x = x_ref[...].astype(jnp.bfloat16)
    w = w_ref[...]
    b = b_ref[...].astype(jnp.float32)
    o_ref[...] = (jnp.dot(x, w, preferred_element_type=jnp.float32) + b).astype(o_ref.dtype)


def _row_tile(n):
    for t in (512, 256, 128):
        if n >= t and n % t == 0:
            return t
    return n  # full extent (block equal to array dim is always legal)


def conv1x1(x_flat, w_t, b_row):
    N, C = x_flat.shape
    E = w_t.shape[1]
    tm = _row_tile(N)
    return pl.pallas_call(
        conv1x1_kernel,
        out_shape=jax.ShapeDtypeStruct((N, E), jnp.float32),
        grid=(N // tm,),
        in_specs=[
            pl.BlockSpec((tm, C), lambda i: (i, 0)),
            pl.BlockSpec((C, E), lambda i: (0, 0)),
            pl.BlockSpec((1, E), lambda i: (0, 0)),
        ],
        out_specs=pl.BlockSpec((tm, E), lambda i: (i, 0)),
        compiler_params=pltpu.CompilerParams(dimension_semantics=("parallel",)),
    )(x_flat, w_t, b_row)


# --------------------------------------------------------------------------------------
# Kernel 2: fused DETR TransformerEncoder (all layers in one pallas_call, grid=(L,))
#   post-norm, normalize_before=False:
#   q = k = x + pos ; self-attn(value=x) ; residual ; LN1 ; FFN(relu) ; residual ; LN2
# --------------------------------------------------------------------------------------
def fused_encoder_kernel(
    src_ref, pos_ref,
    qkv_w_ref, qkv_b_ref, out_w_ref, out_b_ref,
    ln1_w_ref, ln1_b_ref,
    lin1_w_ref, lin1_b_ref, lin2_w_ref, lin2_b_ref,
    ln2_w_ref, ln2_b_ref,
    o_ref, x_scratch,
    *, nheads, head_dim, B, S,
):
    E = nheads * head_dim
    M = B * S
    l = pl.program_id(0)

    # Layer 0: load the conv output into the persistent activation scratch.
    @pl.when(l == 0)
    def _():
        x_scratch[...] = src_ref[...].astype(jnp.float32)

    x = x_scratch[...].reshape(M, E)                              # f32 carried activation
    pos = pos_ref[...].astype(jnp.float32).reshape(M, E)

    qkv_w = qkv_w_ref[0]                                          # [E, 3E] bf16 (Q cols pre-scaled)
    qkv_b = qkv_b_ref[0].astype(jnp.float32)                      # [1, 3E]

    qk_in = (x + pos).astype(jnp.bfloat16)                        # with_pos_embed
    x_bf = x.astype(jnp.bfloat16)

    # Merged Q+K projection (one wide matmul), V from unshifted src.
    qk = jnp.dot(qk_in, qkv_w[:, : 2 * E], preferred_element_type=jnp.float32) + qkv_b[:, : 2 * E]
    v = jnp.dot(x_bf, qkv_w[:, 2 * E:], preferred_element_type=jnp.float32) + qkv_b[:, 2 * E:]
    q = qk[:, :E]
    k = qk[:, E:]

    out_w = out_w_ref[0]                                          # [E, E] bf16 (out_proj.weight.T)
    attn = jnp.zeros((M, E), jnp.float32)
    for h in range(nheads):
        lo, hi = h * head_dim, (h + 1) * head_dim
        qh = q[:, lo:hi].reshape(B, S, head_dim).astype(jnp.bfloat16)
        kh = k[:, lo:hi].reshape(B, S, head_dim).astype(jnp.bfloat16)
        vh = v[:, lo:hi].reshape(B, S, head_dim).astype(jnp.bfloat16)
        s = jnp.einsum('bqd,bkd->bqk', qh, kh, preferred_element_type=jnp.float32)   # [B, S, S]
        s = s - jnp.max(s, axis=-1, keepdims=True)
        p = jnp.exp(s)
        p = p * pl.reciprocal(jnp.sum(p, axis=-1, keepdims=True), approx=True)
        ctx_h = jnp.einsum('bqk,bkd->bqd', p.astype(jnp.bfloat16), vh,
                           preferred_element_type=jnp.float32)                        # [B, S, dh]
        # Fold this head directly into the output projection (no concat of narrow slices).
        attn = attn + jnp.dot(ctx_h.reshape(M, head_dim).astype(jnp.bfloat16),
                              out_w[lo:hi, :], preferred_element_type=jnp.float32)
    attn = attn + out_b_ref[0].astype(jnp.float32)

    # residual + LayerNorm1 (f32)
    y = x + attn
    mu = jnp.mean(y, axis=-1, keepdims=True)
    var = jnp.mean((y - mu) ** 2, axis=-1, keepdims=True)
    y = (y - mu) * jax.lax.rsqrt(var + 1e-5)
    y = y * ln1_w_ref[0].astype(jnp.float32) + ln1_b_ref[0].astype(jnp.float32)

    # FFN: linear1 -> relu -> linear2 (bf16 matmuls, f32 accumulation)
    h1 = jnp.dot(y.astype(jnp.bfloat16), lin1_w_ref[0], preferred_element_type=jnp.float32)
    h1 = jnp.maximum(h1 + lin1_b_ref[0].astype(jnp.float32), 0.0)
    h2 = jnp.dot(h1.astype(jnp.bfloat16), lin2_w_ref[0], preferred_element_type=jnp.float32)
    h2 = h2 + lin2_b_ref[0].astype(jnp.float32)

    # residual + LayerNorm2 (f32)
    z = y + h2
    mu = jnp.mean(z, axis=-1, keepdims=True)
    var = jnp.mean((z - mu) ** 2, axis=-1, keepdims=True)
    z = (z - mu) * jax.lax.rsqrt(var + 1e-5)
    z = z * ln2_w_ref[0].astype(jnp.float32) + ln2_b_ref[0].astype(jnp.float32)

    z_bse = z.reshape(B, S, E)
    x_scratch[...] = z_bse                         # carry to next layer
    o_ref[...] = z_bse.astype(o_ref.dtype)         # constant block index -> written back once


def fused_encoder(src_bse, pos_bse, params, nheads):
    B, S, E = src_bse.shape
    L = params["qkv_w"].shape[0]
    head_dim = E // nheads
    kernel = functools.partial(fused_encoder_kernel, nheads=nheads, head_dim=head_dim, B=B, S=S)

    def wspec(name):
        shape = params[name].shape            # [L, a, b] -> one layer's block per grid step
        return pl.BlockSpec((1,) + shape[1:], lambda l: (l, 0, 0))

    act_spec = pl.BlockSpec((B, S, E), lambda l: (0, 0, 0))

    weight_names = ["qkv_w", "qkv_b", "out_w", "out_b", "ln1_w", "ln1_b",
                    "lin1_w", "lin1_b", "lin2_w", "lin2_b", "ln2_w", "ln2_b"]

    return pl.pallas_call(
        kernel,
        out_shape=jax.ShapeDtypeStruct((B, S, E), jnp.float32),
        grid=(L,),
        in_specs=[act_spec, act_spec] + [wspec(n) for n in weight_names],
        out_specs=act_spec,
        scratch_shapes=[pltpu.VMEM((B, S, E), jnp.float32)],
        compiler_params=pltpu.CompilerParams(dimension_semantics=("arbitrary",)),
    )(src_bse, pos_bse, *[params[n] for n in weight_names])


# --------------------------------------------------------------------------------------
# Glue: DETR sine position embedding (mask is all-False, so cumsum of ones).
# Precomputed once per (B, H, W, E) and passed into the forward path.
# --------------------------------------------------------------------------------------
def sine_pos_embed(B, H, W, E, temperature=10000.0):
    num_pos_feats = E // 2
    scale = 2.0 * math.pi
    eps = 1e-6
    ones = jnp.ones((B, H, W), jnp.float32)
    y_embed = jnp.cumsum(ones, axis=1)
    x_embed = jnp.cumsum(ones, axis=2)
    y_embed = y_embed / (y_embed[:, -1:, :] + eps) * scale
    x_embed = x_embed / (x_embed[:, :, -1:] + eps) * scale
    dim_t = jnp.arange(num_pos_feats, dtype=jnp.float32)
    dim_t = temperature ** (2.0 * jnp.floor(dim_t / 2.0) / num_pos_feats)
    pos_x = x_embed[..., None] / dim_t
    pos_y = y_embed[..., None] / dim_t
    pos_x = jnp.stack(
        (jnp.sin(pos_x[..., 0::2]), jnp.cos(pos_x[..., 1::2])), axis=4
    ).reshape(B, H, W, -1)
    pos_y = jnp.stack(
        (jnp.sin(pos_y[..., 0::2]), jnp.cos(pos_y[..., 1::2])), axis=4
    ).reshape(B, H, W, -1)
    pos = jnp.concatenate((pos_y, pos_x), axis=3)   # [B, H, W, E]
    return jnp.transpose(pos, (0, 3, 1, 2))         # [B, E, H, W]


def precompute_pos(B, H, W, E):
    pos_bchw = sine_pos_embed(B, H, W, E)
    S = H * W
    pos_sbe = jnp.transpose(pos_bchw.reshape(B, E, S), (2, 0, 1))   # [S, B, E]
    pos_bse = jnp.transpose(pos_sbe, (1, 0, 2))                     # [B, S, E]
    return pos_bse, pos_sbe


# --------------------------------------------------------------------------------------
# Full forward (post-backbone part of VisualTransformer.forward)
# --------------------------------------------------------------------------------------
def visual_transformer_forward(feat_nchw, params, pos_bse, pos_sbe, nheads):
    B, C, H, W = feat_nchw.shape
    E = params["conv_w_t"].shape[1]
    S = H * W

    # src = self.conv(x)  (1x1 conv) via row-tiled Pallas matmul kernel
    x_flat = jnp.transpose(feat_nchw, (0, 2, 3, 1)).reshape(B * S, C)     # [N, C_in]
    src_bse = conv1x1(x_flat, params["conv_w_t"], params["conv_b"]).reshape(B, S, E)

    # mask = zeros(bool), flattened
    mask = jnp.zeros((B, S), dtype=jnp.bool_)

    # transformer encoder (all layers fused in one pallas_call; post-norm, no final norm)
    x = fused_encoder(src_bse, pos_bse, params, nheads)

    h = jnp.transpose(x, (1, 0, 2))                                       # [S, B, E]
    return h, mask, pos_sbe


# --------------------------------------------------------------------------------------
# Deterministic parameter initialization (shapes follow the PyTorch __init__).
# Matmul weights are pre-transposed, pre-scaled (Q columns) and cast to bf16.
# --------------------------------------------------------------------------------------
def init_params(key, c_in, hidden_dim, dim_ff, num_layers, nheads):
    E, FF = hidden_dim, dim_ff
    head_dim = E // nheads
    scale = 1.0 / math.sqrt(head_dim)
    keys = jax.random.split(key, 2 + num_layers)

    conv_w = 0.02 * jax.random.normal(keys[0], (E, c_in), jnp.float32)    # [E, C_in, 1, 1] squeezed
    conv_b = 0.02 * jax.random.normal(keys[1], (E,), jnp.float32)

    # (query_pos / row_embed / col_embed exist in __init__ but are unused in forward)
    qkv_w, qkv_b, out_w, out_b = [], [], [], []
    ln1_w, ln1_b, lin1_w, lin1_b = [], [], [], []
    lin2_w, lin2_b, ln2_w, ln2_b = [], [], [], []
    for li in range(num_layers):
        lk = jax.random.split(keys[2 + li], 8)
        in_w = 0.02 * jax.random.normal(lk[0], (3 * E, E), jnp.float32)
        in_b = 0.02 * jax.random.normal(lk[1], (3 * E,), jnp.float32)
        # fold the 1/sqrt(head_dim) attention scale into the Q rows of in_proj
        in_w = in_w.at[:E, :].multiply(scale)
        in_b = in_b.at[:E].multiply(scale)
        o_w = 0.02 * jax.random.normal(lk[2], (E, E), jnp.float32)
        o_b = 0.02 * jax.random.normal(lk[3], (E,), jnp.float32)
        l1_w = 0.02 * jax.random.normal(lk[4], (FF, E), jnp.float32)
        l1_b = 0.02 * jax.random.normal(lk[5], (FF,), jnp.float32)
        l2_w = 0.02 * jax.random.normal(lk[6], (E, FF), jnp.float32)
        l2_b = 0.02 * jax.random.normal(lk[7], (E,), jnp.float32)

        qkv_w.append(in_w.T.astype(jnp.bfloat16))        # [E, 3E]
        qkv_b.append(in_b.reshape(1, 3 * E))
        out_w.append(o_w.T.astype(jnp.bfloat16))         # [E, E]
        out_b.append(o_b.reshape(1, E))
        ln1_w.append(jnp.ones((1, E), jnp.float32))
        ln1_b.append(jnp.zeros((1, E), jnp.float32))
        lin1_w.append(l1_w.T.astype(jnp.bfloat16))       # [E, FF]
        lin1_b.append(l1_b.reshape(1, FF))
        lin2_w.append(l2_w.T.astype(jnp.bfloat16))       # [FF, E]
        lin2_b.append(l2_b.reshape(1, E))
        ln2_w.append(jnp.ones((1, E), jnp.float32))
        ln2_b.append(jnp.zeros((1, E), jnp.float32))

    return dict(
        conv_w_t=conv_w.T.astype(jnp.bfloat16),          # [C_in, E]
        conv_b=conv_b.reshape(1, E),
        qkv_w=jnp.stack(qkv_w), qkv_b=jnp.stack(qkv_b),
        out_w=jnp.stack(out_w), out_b=jnp.stack(out_b),
        ln1_w=jnp.stack(ln1_w), ln1_b=jnp.stack(ln1_b),
        lin1_w=jnp.stack(lin1_w), lin1_b=jnp.stack(lin1_b),
        lin2_w=jnp.stack(lin2_w), lin2_b=jnp.stack(lin2_b),
        ln2_w=jnp.stack(ln2_w), ln2_b=jnp.stack(ln2_b),
    )


if __name__ == "__main__":
    # Small shapes standing in for the real model
    # (real: C_in=2048, hidden=256, nheads=8, ff=2048, 6 layers, S=H*W=49)
    B, C_IN, H, W = 2, 64, 8, 8
    HIDDEN, NHEADS, DIM_FF, N_LAYERS = 32, 4, 64, 2

    key = jax.random.PRNGKey(0)
    k_feat, k_params = jax.random.split(key)
    # stand-in for the CLIP ResNet layer4 output feature map
    feat = jax.random.normal(k_feat, (B, C_IN, H, W), jnp.float32)
    params = init_params(k_params, C_IN, HIDDEN, DIM_FF, N_LAYERS, NHEADS)
    pos_bse, pos_sbe = precompute_pos(B, H, W, HIDDEN)   # hoisted out of the forward path

    h, mask, pos = visual_transformer_forward(feat, params, pos_bse, pos_sbe, NHEADS)
    jax.block_until_ready((h, mask, pos))

    assert h.shape == (H * W, B, HIDDEN)
    assert mask.shape == (B, H * W) and mask.dtype == jnp.bool_
    assert pos.shape == (H * W, B, HIDDEN)
    print("KERNEL_OK")
</pallas_src>

<mosaic_0001>
module attributes {stable_mosaic.version = 11 : i64} {
  func.func @conv1x1_kernel(%arg0: i32, %arg1: memref<128x64xf32, #tpu.memory_space<vmem>>, %arg2: memref<64x32xbf16, #tpu.memory_space<vmem>>, %arg3: memref<1x32xf32, #tpu.memory_space<vmem>>, %arg4: memref<128x32xf32, #tpu.memory_space<vmem>>) attributes {dimension_semantics = [#tpu.dimension_semantics<parallel>], iteration_bounds = array<i64: 1>, scalar_prefetch = 0 : i64, scratch_operands = 0 : i64, tpu.core_type = #tpu.core_type<tc>, window_params = [{transform_indices = @transform_0, window_bounds = array<i64: 128, 64>}, {pipeline_mode = #tpu.pipeline_mode<synchronous>, transform_indices = @transform_1, window_bounds = array<i64: 64, 32>}, {pipeline_mode = #tpu.pipeline_mode<synchronous>, transform_indices = @transform_2, window_bounds = array<i64: 1, 32>}, {transform_indices = @transform_3, window_bounds = array<i64: 128, 32>}]} {
    %c0 = arith.constant 0 : index
    %c0_0 = arith.constant 0 : index
    %0 = vector.load %arg1[%c0, %c0_0] : memref<128x64xf32, #tpu.memory_space<vmem>>, vector<128x64xf32>
    %1 = arith.truncf %0 : vector<128x64xf32> to vector<128x64xbf16>
    %c0_1 = arith.constant 0 : index
    %c0_2 = arith.constant 0 : index
    %2 = vector.load %arg2[%c0_1, %c0_2] : memref<64x32xbf16, #tpu.memory_space<vmem>>, vector<64x32xbf16>
    %c0_3 = arith.constant 0 : index
    %c0_4 = arith.constant 0 : index
    %3 = vector.load %arg3[%c0_3, %c0_4] : memref<1x32xf32, #tpu.memory_space<vmem>>, vector<1x32xf32>
    %cst = arith.constant dense<0.000000e+00> : vector<128x32xf32>
    %4 = tpu.matmul %1, %2, %cst {dimension_numbers = #tpu.dot_dimension_numbers<[1], [0], [0], [1], [0, 0, 1, 1], [], []>} : vector<128x64xbf16>, vector<64x32xbf16>, vector<128x32xf32> -> vector<128x32xf32>
    %5 = vector.broadcast %3 : vector<1x32xf32> to vector<128x32xf32>
    %6 = arith.addf %4, %5 : vector<128x32xf32>
    %c0_5 = arith.constant 0 : index
    %c0_6 = arith.constant 0 : index
    %7 = vector.load %arg4[%c0_5, %c0_6] : memref<128x32xf32, #tpu.memory_space<vmem>>, vector<128x32xf32>
    tpu.vector_store %arg4[%c0_5, %c0_6], %6 {strides = array<i32>} : memref<128x32xf32, #tpu.memory_space<vmem>>, vector<128x32xf32>,
    return
  }
  func.func @transform_0(%arg0: i32) -> (i32, i32) {
    %c0_i32 = arith.constant 0 : i32
    %c0_i32_0 = arith.constant 0 : i32
    return %arg0, %c0_i32 : i32, i32
  }
  func.func @transform_1(%arg0: i32) -> (i32, i32) {
    %c0_i32 = arith.constant 0 : i32
    %c0_i32_0 = arith.constant 0 : i32
    %c0_i32_1 = arith.constant 0 : i32
    return %c0_i32, %c0_i32_0 : i32, i32
  }
  func.func @transform_2(%arg0: i32) -> (i32, i32) {
    %c0_i32 = arith.constant 0 : i32
    %c0_i32_0 = arith.constant 0 : i32
    %c0_i32_1 = arith.constant 0 : i32
    return %c0_i32, %c0_i32_0 : i32, i32
  }
  func.func @transform_3(%arg0: i32) -> (i32, i32) {
    %c0_i32 = arith.constant 0 : i32
    %c0_i32_0 = arith.constant 0 : i32
    return %arg0, %c0_i32 : i32, i32
  }
}

</mosaic_0001>

<llo_original>
// kernel: tpu_custom_call.1
$region0: #{tpu_custom_call.1}
  #allocation0 [shape = 'u32[]', space=smem, size = 0x4, offset = 0x4, fixed_abs, tag = 'smem constant byte address 0x4 - core index']
  #allocation1 [shape = 'u32[144,128]{1,0:T(1,128)}', space=vmem, size = 0x12000, scoped, tag = 'internal scratch']
  %s0 = inlined_call_operand.vmem [shape: f32[128,64], index: 0, kind: input, shape index: {}]
  %s1 = inlined_call_operand.vmem [shape: bf16[64,32], index: 1, kind: input, shape index: {}]
  %s2 = inlined_call_operand.vmem [shape: f32[1,32], index: 2, kind: input, shape index: {}]
  %s3 = inlined_call_operand.vmem [shape: f32[128,32], index: 3, kind: output, shape index: {}]
  %s4 = sld [smem:[#allocation0]]
  $region22: #{tpu_custom_call.1} parent=0
    _
  %s6 = ssub.s32 1, %s4
  %s7 = scalar_select 0, %s6, %s4
  // Predicated region
  $region2: #{tpu_custom_call.1} parent=0 // pred_check
    _
  $region3: #{tpu_custom_call.1} parent=0 // pred_check_branch
    %9 = sbr.rel (0) target = $region5
  $region4: #{tpu_custom_call.1} parent=0 // pred_region
    _
  $region5: #{tpu_custom_call.1} parent=0 // pred_fallthru
    _
  // Predicated region
  $region6: #{tpu_custom_call.1} parent=0 // pred_check
    _
  $region7: #{tpu_custom_call.1} parent=0 // pred_check_branch
    %11 = sbr.rel (0) target = $region9
  $region8: #{tpu_custom_call.1} parent=0 // pred_region
    _
  $region9: #{tpu_custom_call.1} parent=0 // pred_fallthru
    _
  // Predicated region
  $region10: #{tpu_custom_call.1} parent=0 // pred_check
    _
  $region11: #{tpu_custom_call.1} parent=0 // pred_check_branch
    %13 = sbr.rel (0) target = $region13
  $region12: #{tpu_custom_call.1} parent=0 // pred_region
    _
  $region13: #{tpu_custom_call.1} parent=0 // pred_fallthru
    _
  %v15 = vld [vmem:[%s0] sm:$0xff]
  %v16 = vld [vmem:[%s0 + $0x8] sm:$0xff]
  %v17 = vld [vmem:[%s0 + $0x10] sm:$0xff]
  %v18 = vld [vmem:[%s0 + $0x18] sm:$0xff]
  %v19 = vld [vmem:[%s0 + $0x20] sm:$0xff]
  %v20 = vld [vmem:[%s0 + $0x28] sm:$0xff]
  %v21 = vld [vmem:[%s0 + $0x30] sm:$0xff]
  %v22 = vld [vmem:[%s0 + $0x38] sm:$0xff]
  %v23 = vld [vmem:[%s0 + $0x40] sm:$0xff]
  %v24 = vld [vmem:[%s0 + $0x48] sm:$0xff]
  %v25 = vld [vmem:[%s0 + $0x50] sm:$0xff]
  %v26 = vld [vmem:[%s0 + $0x58] sm:$0xff]
  %v27 = vld [vmem:[%s0 + $0x60] sm:$0xff]
  %v28 = vld [vmem:[%s0 + $0x68] sm:$0xff]
  %v29 = vld [vmem:[%s0 + $0x70] sm:$0xff]
  %v30 = vld [vmem:[%s0 + $0x78] sm:$0xff]
  %v31 = vpack.c.bf16 %v16, %v15
  %v32 = vpack.c.bf16 %v18, %v17
  %v33 = vpack.c.bf16 %v20, %v19
  %v34 = vpack.c.bf16 %v22, %v21
  %v35 = vpack.c.bf16 %v24, %v23
  %v36 = vpack.c.bf16 %v26, %v25
  %v37 = vpack.c.bf16 %v28, %v27
  %v38 = vpack.c.bf16 %v30, %v29
  %v39 = vld [vmem:[%s1] sm:$0xf]
  %v40 = vld [vmem:[%s1 + $0x4] sm:$0xf]
  %v41 = vld [vmem:[%s1 + $0x8] sm:$0xf]
  %v42 = vld [vmem:[%s1 + $0xc] sm:$0xf]
  %v43 = vld [vmem:[%s1 + $0x10] sm:$0xf]
  %v44 = vld [vmem:[%s1 + $0x14] sm:$0xf]
  %v45 = vld [vmem:[%s1 + $0x18] sm:$0xf]
  %v46 = vld [vmem:[%s1 + $0x1c] sm:$0xf]
  %v47 = vld [vmem:[%s2] sm:$0x1]
  %v49 = vlaneseq
  %v50 = vshrl.u32 %v49, 7
  %v51 = vsub.s32 0, %v50
  %v52 = vrot.slane %v47, %v51
  %v62 = vunpack.c.l.b16 %v39
  %v63 = vunpack.c.l.b16 %v40
  %v64 = vunpack.c.l.b16 %v41
  %v65 = vunpack.c.l.b16 %v42
  %v66 = vunpack.c.l.b16 %v43
  %v67 = vunpack.c.l.b16 %v44
  %v68 = vunpack.c.l.b16 %v45
  %v69 = vunpack.c.l.b16 %v46
  %v70 = vpack.c.b16 %v63, %v62
  %v71 = vpack.c.b16 %v65, %v64
  %v72 = vpack.c.b16 %v67, %v66
  %v73 = vpack.c.b16 %v69, %v68
  %vm78 = vcmask 523264
  %v80 = vsel %vm78, %v31, 0
  %v83 = vsel %vm78, %v32, 0
  %v86 = vsel %vm78, %v33, 0
  %v89 = vsel %vm78, %v34, 0
  %v92 = vsel %vm78, %v35, 0
  %v95 = vsel %vm78, %v36, 0
  %v98 = vsel %vm78, %v37, 0
  %v101 = vsel %vm78, %v38, 0
  %103 = vmatprep.subr.bf16.mxu0 0
  %104 = vmatpush1.bf16.msra.mxu0 %v70
  %105 = vmatprep.subr.bf16.mxu0 0
  %106 = vmatpush1.bf16.msra.mxu0 %v71
  %107 = vmatprep.subr.bf16.mxu0 0
  %108 = vmatpush1.bf16.msra.mxu0 %v72
  %109 = vmatprep.subr.bf16.mxu0 0
  %110 = vmatpush1.bf16.msra.mxu0 %v73
  %111 = vmatprep.subr.bf16.mxu0 0
  %112 = vmatpush1.bf16.msra.mxu0 0
  %113 = vmatprep.subr.bf16.mxu0 0
  %114 = vmatpush1.bf16.msra.mxu0 0
  %115 = vmatprep.subr.bf16.mxu0 0
  %116 = vmatpush1.bf16.msra.mxu0 0
  %117 = vmatprep.subr.bf16.mxu0 0
  %118 = vmatpush1.bf16.msra.mxu0 0
  %119 = vmatprep.subr.bf16.mxu0 0
  %120 = vmatpush1.bf16.msra.mxu0 0
  %121 = vmatprep.subr.bf16.mxu0 0
  %122 = vmatpush1.bf16.msra.mxu0 0
  %123 = vmatprep.subr.bf16.mxu0 0
  %124 = vmatpush1.bf16.msra.mxu0 0
  %125 = vmatprep.subr.bf16.mxu0 0
  %126 = vmatpush1.bf16.msra.mxu0 0
  %127 = vmatprep.subr.bf16.mxu0 0
  %128 = vmatpush1.bf16.msra.mxu0 0
  %129 = vmatprep.subr.bf16.mxu0 0
  %130 = vmatpush1.bf16.msra.mxu0 0
  %131 = vmatprep.subr.bf16.mxu0 0
  %132 = vmatpush1.bf16.msra.mxu0 0
  %133 = vmatprep.subr.bf16.mxu0 0
  %134 = vmatpush1.bf16.msra.mxu0 0
  %135 = vmatprep.mubr.bf16.mxu0 0
  %136 = vmatmul.mubr.bf16.gmra.mrb[0].mxu0 %v80
  %v137 = vpop.f32.mrb[0].mxu0
  %v138 = vadd.f32 %v52, %v137
  %v139 = vpop.f32.mrb[0].mxu0
  %v140 = vpop.f32.mrb[0].mxu0
  %v141 = vadd.f32 %v52, %v140
  %v142 = vpop.f32.mrb[0].mxu0
  %143 = vmatprep.mubr.bf16.mxu0 0
  %144 = vmatmul.mubr.bf16.gmra.mrb[0].mxu0 %v83
  %v145 = vpop.f32.mrb[0].mxu0
  %v146 = vadd.f32 %v52, %v145
  %v147 = vpop.f32.mrb[0].mxu0
  %v148 = vpop.f32.mrb[0].mxu0
  %v149 = vadd.f32 %v52, %v148
  %v150 = vpop.f32.mrb[0].mxu0
  %151 = vmatprep.mubr.bf16.mxu0 0
  %152 = vmatmul.mubr.bf16.gmra.mrb[0].mxu0 %v86
  %v153 = vpop.f32.mrb[0].mxu0
  %v154 = vadd.f32 %v52, %v153
  %v155 = vpop.f32.mrb[0].mxu0
  %v156 = vpop.f32.mrb[0].mxu0
  %v157 = vadd.f32 %v52, %v156
  %v158 = vpop.f32.mrb[0].mxu0
  %159 = vmatprep.mubr.bf16.mxu0 0
  %160 = vmatmul.mubr.bf16.gmra.mrb[0].mxu0 %v89
  %v161 = vpop.f32.mrb[0].mxu0
  %v162 = vadd.f32 %v52, %v161
  %v163 = vpop.f32.mrb[0].mxu0
  %v164 = vpop.f32.mrb[0].mxu0
  %v165 = vadd.f32 %v52, %v164
  %v166 = vpop.f32.mrb[0].mxu0
  %167 = vmatprep.mubr.bf16.mxu0 0
  %168 = vmatmul.mubr.bf16.gmra.mrb[0].mxu0 %v92
  %v169 = vpop.f32.mrb[0].mxu0
  %v170 = vadd.f32 %v52, %v169
  %v171 = vpop.f32.mrb[0].mxu0
  %v172 = vpop.f32.mrb[0].mxu0
  %v173 = vadd.f32 %v52, %v172
  %v174 = vpop.f32.mrb[0].mxu0
  %175 = vmatprep.mubr.bf16.mxu0 0
  %176 = vmatmul.mubr.bf16.gmra.mrb[0].mxu0 %v95
  %v177 = vpop.f32.mrb[0].mxu0
  %v178 = vadd.f32 %v52, %v177
  %v179 = vpop.f32.mrb[0].mxu0
  %v180 = vpop.f32.mrb[0].mxu0
  %v181 = vadd.f32 %v52, %v180
  %v182 = vpop.f32.mrb[0].mxu0
  %183 = vmatprep.mubr.bf16.mxu0 0
  %184 = vmatmul.mubr.bf16.gmra.mrb[0].mxu0 %v98
  %v185 = vpop.f32.mrb[0].mxu0
  %v186 = vadd.f32 %v52, %v185
  %v187 = vpop.f32.mrb[0].mxu0
  %v188 = vpop.f32.mrb[0].mxu0
  %v189 = vadd.f32 %v52, %v188
  %v190 = vpop.f32.mrb[0].mxu0
  %191 = vmatprep.mubr.bf16.mxu0 0
  %192 = vmatmul.mubr.bf16.gmra.mrb[0].mxu0 %v101
  %v193 = vpop.f32.mrb[0].mxu0
  %v194 = vadd.f32 %v52, %v193
  %v195 = vpop.f32.mrb[0].mxu0
  %v196 = vpop.f32.mrb[0].mxu0
  %v197 = vadd.f32 %v52, %v196
  %v198 = vpop.f32.mrb[0].mxu0
  %199 = vdwg.mxu0
  %vm200 = vcmask 261120
  %201 = vst.msk [vmem:[%s3] sm:$0xff] %vm200, %v138
  %202 = vst.msk [vmem:[%s3 + $0x8] sm:$0xff] %vm200, %v141
  %203 = vst.msk [vmem:[%s3 + $0x10] sm:$0xff] %vm200, %v146
  %204 = vst.msk [vmem:[%s3 + $0x18] sm:$0xff] %vm200, %v149
  %205 = vst.msk [vmem:[%s3 + $0x20] sm:$0xff] %vm200, %v154
  %206 = vst.msk [vmem:[%s3 + $0x28] sm:$0xff] %vm200, %v157
  %207 = vst.msk [vmem:[%s3 + $0x30] sm:$0xff] %vm200, %v162
  %208 = vst.msk [vmem:[%s3 + $0x38] sm:$0xff] %vm200, %v165
  %209 = vst.msk [vmem:[%s3 + $0x40] sm:$0xff] %vm200, %v170
  %210 = vst.msk [vmem:[%s3 + $0x48] sm:$0xff] %vm200, %v173
  %211 = vst.msk [vmem:[%s3 + $0x50] sm:$0xff] %vm200, %v178
  %212 = vst.msk [vmem:[%s3 + $0x58] sm:$0xff] %vm200, %v181
  %213 = vst.msk [vmem:[%s3 + $0x60] sm:$0xff] %vm200, %v186
  %214 = vst.msk [vmem:[%s3 + $0x68] sm:$0xff] %vm200, %v189
  %215 = vst.msk [vmem:[%s3 + $0x70] sm:$0xff] %vm200, %v194
  %216 = vst.msk [vmem:[%s3 + $0x78] sm:$0xff] %vm200, %v197
  // Predicated region
  $region14: #{tpu_custom_call.1} parent=0 // pred_check
    _
  $region15: #{tpu_custom_call.1} parent=0 // pred_check_branch
    %218 = sbr.rel (0) target = $region17
  $region16: #{tpu_custom_call.1} parent=0 // pred_region
    _
  $region17: #{tpu_custom_call.1} parent=0 // pred_fallthru
    _
  // Predicated region
  $region18: #{tpu_custom_call.1} parent=0 // pred_check
    _
  $region19: #{tpu_custom_call.1} parent=0 // pred_check_branch
    %220 = sbr.rel (0) target = $region21
  $region20: #{tpu_custom_call.1} parent=0 // pred_region
    _
  $region21: #{tpu_custom_call.1} parent=0 // pred_fallthru
    _

</llo_original>
